<compile_context>
chip_gen: v5e
topology: v5e:2x2
jax: 0.10.0
libtpu: 0.0.40
codegen_flags: <defaults>
</compile_context>

<pallas_src>
import functools

import jax
import jax.numpy as jnp
import numpy as np
from jax.experimental import pallas as pl


# ----------------------------------------------------------------------------
# Fused kernel: Chebyshev graph conv + bias + LSTM gates, one shot.
# ----------------------------------------------------------------------------
def _fused_convlstm_kernel(x0_ref, lbd_ref, w_ref, bias_ref, c_ref,
                           h_out_ref, c_out_ref, *, K):
    # x0_ref  : (N*M, Fp)    T_0 input, rows ordered (gate, batch, row-in-gate),
    #                        features zero-padded to Fp (multiple of 128 lanes)
    # lbd_ref : (N*M, N*M)   block-diagonal rescaled Laplacian (L - I per batch), same row order
    # w_ref   : (K*Fp, 4H)   Chebyshev weights re-indexed to [k*Fp + f, fo] (zero pad rows)
    # bias_ref: (N*M, 4H)    bias pre-arranged into the raw `view(N, Fout, M)` row layout
    # c_ref   : (N*M//4, 4H) c_cur in the same raw row layout
    # outputs : (N*M//4, 4H)
    nq = c_ref.shape[0]                      # rows per gate block = N * M // 4

    # --- Chebyshev recurrence on the MXU (all batches at once via the block-diag L) ---
    x0 = x0_ref[...]
    lbd = lbd_ref[...]
    xs = [x0]
    if K > 1:
        x1 = jnp.dot(lbd, x0, preferred_element_type=jnp.float32)
        xs.append(x1)
        for _ in range(2, K):
            x2 = 2.0 * jnp.dot(lbd, x1, preferred_element_type=jnp.float32) - x0
            xs.append(x2)
            x0, x1 = x1, x2

    # --- single fused weight contraction over the whole K*Fp axis (128-aligned pieces) ---
    xcat = xs[0] if K == 1 else jnp.concatenate(xs, axis=1)            # (N*M, K*Fp)
    y = jnp.dot(xcat, w_ref[...], preferred_element_type=jnp.float32)  # (N*M, 4H)

    # --- LSTM gate epilogue (rows are gate-major, so each gate is one aligned row block) ---
    cc = y + bias_ref[...]
    gi = jax.nn.sigmoid(cc[0 * nq:1 * nq, :])
    gf = jax.nn.sigmoid(cc[1 * nq:2 * nq, :])
    go = jax.nn.sigmoid(cc[2 * nq:3 * nq, :])
    gg = jnp.tanh(cc[3 * nq:4 * nq, :])
    c_next = gf * c_ref[...] + gi * gg
    c_out_ref[...] = c_next
    h_out_ref[...] = go * jnp.tanh(c_next)


# ----------------------------------------------------------------------------
# Time-step-invariant parameter preprocessing (hoist out of any RNN scan).
# ----------------------------------------------------------------------------
def _round_up(a, b):
    return (a + b - 1) // b * b


def prepare_cell_params(L_dense, weight, bias, *, K, input_dim, hidden_dim, n_batch, n_vertex):
    M, N, H = n_vertex, n_batch, hidden_dim
    Fin = input_dim + H
    Fout = 4 * H
    assert M % 4 == 0, "vertex count must be divisible by 4 (gate split of the raw view)"
    q = M // 4
    Fp = _round_up(Fin, 128)                 # lane-aligned Chebyshev feature width

    # graph.rescale_L(L, lmax=2):  (2/lmax)*L - I = L - I
    L_rs = L_dense.astype(jnp.float32) - jnp.eye(M, dtype=jnp.float32)

    # Kernel row order r' = gate*(N*q) + n*q + lr, with vertex m = gate*q + lr.
    # perm[r'] = original row index n*M + m.
    perm = np.arange(N * M).reshape(N, 4, q).transpose(1, 0, 2).reshape(-1)

    # Block-diagonal Laplacian over the batch, expressed in the permuted row basis:
    # one (N*M, N*M) @ (N*M, Fp) matmul implements the per-batch Chebyshev step.
    # TODO(synk): original uses a scipy sparse Laplacian; dense is used here (M is small).
    Lbd = jnp.kron(jnp.eye(N, dtype=jnp.float32), L_rs)
    Lbd = Lbd[perm][:, perm]

    # weight[(f*K + k), fo]  ->  W_pad[(k*Fp + f), fo]   (zero rows for the lane padding)
    W_r = jnp.transpose(weight.astype(jnp.float32).reshape(Fin, K, Fout), (1, 0, 2))  # (K,Fin,Fout)
    W_pad = jnp.zeros((K, Fp, Fout), jnp.float32).at[:, :Fin, :].set(W_r).reshape(K * Fp, Fout)

    # bias (1, Fout, 1) -> per-row bias in the raw `view(N, Fout, M)` layout, gate-major,
    # tiled over the batch.  bias_yb[m', fo'] = bias[(m'*Fout + fo') // M].
    bias_yb = jnp.repeat(bias.astype(jnp.float32).reshape(Fout), M).reshape(M, Fout)
    bias_rows = jnp.tile(bias_yb.reshape(4, q, Fout), (1, N, 1)).reshape(N * M, Fout)

    return Lbd, W_pad, bias_rows, Fp


# ----------------------------------------------------------------------------
# ConvLSTMCell.forward(input_tensor, (h_cur, c_cur))
# ----------------------------------------------------------------------------
def conv_lstm_cell(input_tensor, cur_state, params, *, K, hidden_dim):
    Lbd, W_pad, bias_rows, Fp = params
    h_cur, c_cur = cur_state
    x = input_tensor.astype(jnp.float32)
    h_cur = h_cur.astype(jnp.float32)
    c_cur = c_cur.astype(jnp.float32)

    N, Cin, M = x.shape
    H = hidden_dim
    Fin = Cin + H
    Fout = 4 * H
    q = M // 4
    nq = N * q

    # combined = cat([x, h], dim=1); rows reordered to (gate, batch, row-in-gate);
    # feature axis zero-padded to Fp.  (Small XLA relayout, fused into one copy.)
    combined = jnp.concatenate([x, h_cur], axis=1)                      # (N, Fin, M)
    x0 = jnp.transpose(combined, (2, 0, 1))                             # (M, N, Fin)
    x0 = x0.reshape(4, q, N, Fin).transpose(0, 2, 1, 3).reshape(N * M, Fin)
    x0 = jnp.pad(x0, ((0, 0), (0, Fp - Fin)))                           # (N*M, Fp)

    # c_cur in the gate-epilogue row layout (pure raw reshape, no data movement).
    c_rows = c_cur.reshape(nq, Fout)

    kernel = functools.partial(_fused_convlstm_kernel, K=K)
    h_rows, c_next_rows = pl.pallas_call(
        kernel,
        out_shape=(jax.ShapeDtypeStruct((nq, Fout), jnp.float32),
                   jax.ShapeDtypeStruct((nq, Fout), jnp.float32)),
    )(x0, Lbd, W_pad, bias_rows, c_rows)

    # Undo the raw-view row layout (pure reshape).
    h_next = h_rows.reshape(N, H, M)
    c_next = c_next_rows.reshape(N, H, M)
    return h_next, c_next


# ----------------------------------------------------------------------------
# Pure-JAX reference (mirrors the PyTorch chebyshev5 + gate code literally).
# ----------------------------------------------------------------------------
def _reference_forward(x, h, c, L_dense, W, b, K, hidden_dim):
    N, Cin, M = x.shape
    Fin = Cin + hidden_dim
    Fout = 4 * hidden_dim
    combined = jnp.concatenate([x, h], axis=1)
    L_rs = L_dense - jnp.eye(M, dtype=jnp.float32)
    x0 = jnp.transpose(combined, (2, 1, 0)).reshape(M, Fin * N)
    xs = [x0]
    if K > 1:
        x1 = L_rs @ x0
        xs.append(x1)
    for _ in range(2, K):
        x2 = 2.0 * (L_rs @ x1) - x0
        xs.append(x2)
        x0, x1 = x1, x2
    xk = jnp.stack(xs, 0).reshape(K, M, Fin, N)
    xk = jnp.transpose(xk, (3, 1, 2, 0)).reshape(N * M, Fin * K)
    y = (xk @ W).reshape(N, Fout, M) + b            # raw reinterpret, as in the PyTorch .view
    cc_i, cc_f, cc_o, cc_g = jnp.split(y, 4, axis=1)
    i = jax.nn.sigmoid(cc_i)
    f = jax.nn.sigmoid(cc_f)
    o = jax.nn.sigmoid(cc_o)
    g = jnp.tanh(cc_g)
    c_next = f * c + i * g
    h_next = o * jnp.tanh(c_next)
    return h_next, c_next


if __name__ == "__main__":
    # Small deterministic configuration.
    N, input_dim, hidden_dim, M, K = 2, 4, 32, 16, 3
    Fin = input_dim + hidden_dim          # 36
    Fout = 4 * hidden_dim                 # 128

    key = jax.random.PRNGKey(0)
    kx, kh, kc, ka, kb = jax.random.split(key, 5)

    x = jax.random.normal(kx, (N, input_dim, M), dtype=jnp.float32)
    h = jax.random.normal(kh, (N, hidden_dim, M), dtype=jnp.float32)
    c = jax.random.normal(kc, (N, hidden_dim, M), dtype=jnp.float32)

    # Synthetic deterministic graph: symmetric adjacency -> normalized Laplacian
    # (eigenvalues in [0, 2], consistent with lmax=2 used by graph.rescale_L).
    A = jax.random.uniform(ka, (M, M), dtype=jnp.float32)
    A = 0.5 * (A + A.T) * (1.0 - jnp.eye(M, dtype=jnp.float32))
    d = jnp.sum(A, axis=1)
    Dm12 = jnp.diag(1.0 / jnp.sqrt(d))
    L = jnp.eye(M, dtype=jnp.float32) - Dm12 @ A @ Dm12

    # GCLayer parameters (deterministic, matching __init__ shapes):
    #   weight = ones(Fin*K, Fout) / (Fin*K*Fout),  bias ~ U[0,1) of shape (1, Fout, 1)
    weight = jnp.ones((Fin * K, Fout), dtype=jnp.float32) / float(Fin * K * Fout)
    bias = jax.random.uniform(kb, (1, Fout, 1), dtype=jnp.float32)

    # Hoisted (time-step-invariant) preprocessing, then one fused cell step.
    params = prepare_cell_params(L, weight, bias, K=K, input_dim=input_dim,
                                 hidden_dim=hidden_dim, n_batch=N, n_vertex=M)
    h_next, c_next = conv_lstm_cell(x, (h, c), params, K=K, hidden_dim=hidden_dim)
    jax.block_until_ready((h_next, c_next))

    h_ref, c_ref = _reference_forward(x, h, c, L, weight, bias, K, hidden_dim)
    np.testing.assert_allclose(np.asarray(c_next), np.asarray(c_ref), rtol=2e-3, atol=1e-3)
    np.testing.assert_allclose(np.asarray(h_next), np.asarray(h_ref), rtol=2e-3, atol=1e-3)

    print("KERNEL_OK")
</pallas_src>

<mosaic_0001>
module attributes {stable_mosaic.version = 11 : i64} {
  func.func @_fused_convlstm_kernel(%arg0: memref<32x128xf32, #tpu.memory_space<vmem>>, %arg1: memref<32x32xf32, #tpu.memory_space<vmem>>, %arg2: memref<384x128xf32, #tpu.memory_space<vmem>>, %arg3: memref<32x128xf32, #tpu.memory_space<vmem>>, %arg4: memref<8x128xf32, #tpu.memory_space<vmem>>, %arg5: memref<8x128xf32, #tpu.memory_space<vmem>>, %arg6: memref<8x128xf32, #tpu.memory_space<vmem>>) attributes {dimension_semantics = [], scalar_prefetch = 0 : i64, scratch_operands = 0 : i64, tpu.core_type = #tpu.core_type<tc>} {
    %c0 = arith.constant 0 : index
    %c0_0 = arith.constant 0 : index
    %0 = vector.load %arg0[%c0, %c0_0] : memref<32x128xf32, #tpu.memory_space<vmem>>, vector<32x128xf32>
    %c0_1 = arith.constant 0 : index
    %c0_2 = arith.constant 0 : index
    %1 = vector.load %arg1[%c0_1, %c0_2] : memref<32x32xf32, #tpu.memory_space<vmem>>, vector<32x32xf32>
    %cst = arith.constant dense<0.000000e+00> : vector<32x128xf32>
    %2 = tpu.matmul %1, %0, %cst {dimension_numbers = #tpu.dot_dimension_numbers<[1], [0], [0], [1], [0, 0, 1, 1], [], []>} : vector<32x32xf32>, vector<32x128xf32>, vector<32x128xf32> -> vector<32x128xf32>
    %cst_3 = arith.constant dense<0.000000e+00> : vector<32x128xf32>
    %3 = tpu.matmul %1, %2, %cst_3 {dimension_numbers = #tpu.dot_dimension_numbers<[1], [0], [0], [1], [0, 0, 1, 1], [], []>} : vector<32x32xf32>, vector<32x128xf32>, vector<32x128xf32> -> vector<32x128xf32>
    %cst_4 = arith.constant 2.000000e+00 : f32
    %4 = vector.broadcast %cst_4 : f32 to vector<32x128xf32>
    %5 = arith.mulf %4, %3 : vector<32x128xf32>
    %6 = arith.subf %5, %0 : vector<32x128xf32>
    %7 = tpu.concatenate %0, %2, %6 in 1 : vector<32x128xf32>, vector<32x128xf32>, vector<32x128xf32> -> vector<32x384xf32>
    %c0_5 = arith.constant 0 : index
    %c0_6 = arith.constant 0 : index
    %8 = vector.load %arg2[%c0_5, %c0_6] : memref<384x128xf32, #tpu.memory_space<vmem>>, vector<384x128xf32>
    %cst_7 = arith.constant dense<0.000000e+00> : vector<32x128xf32>
    %9 = tpu.matmul %7, %8, %cst_7 {dimension_numbers = #tpu.dot_dimension_numbers<[1], [0], [0], [1], [0, 0, 1, 1], [], []>} : vector<32x384xf32>, vector<384x128xf32>, vector<32x128xf32> -> vector<32x128xf32>
    %c0_8 = arith.constant 0 : index
    %c0_9 = arith.constant 0 : index
    %10 = vector.load %arg3[%c0_8, %c0_9] : memref<32x128xf32, #tpu.memory_space<vmem>>, vector<32x128xf32>
    %11 = arith.addf %9, %10 : vector<32x128xf32>
    %12 = vector.extract_strided_slice %11 {offsets = [0, 0], sizes = [8, 128], strides = [1, 1]} : vector<32x128xf32> to vector<8x128xf32>
    %13 = arith.negf %12 : vector<8x128xf32>
    %14 = math.exp %13 : vector<8x128xf32>
    %cst_10 = arith.constant 1.000000e+00 : f32
    %15 = vector.broadcast %cst_10 : f32 to vector<8x128xf32>
    %16 = arith.addf %15, %14 : vector<8x128xf32>
    %17 = arith.divf %15, %16 : vector<8x128xf32>
    %18 = vector.extract_strided_slice %11 {offsets = [8, 0], sizes = [8, 128], strides = [1, 1]} : vector<32x128xf32> to vector<8x128xf32>
    %19 = arith.negf %18 : vector<8x128xf32>
    %20 = math.exp %19 : vector<8x128xf32>
    %cst_11 = arith.constant 1.000000e+00 : f32
    %21 = vector.broadcast %cst_11 : f32 to vector<8x128xf32>
    %22 = arith.addf %21, %20 : vector<8x128xf32>
    %23 = arith.divf %21, %22 : vector<8x128xf32>
    %24 = vector.extract_strided_slice %11 {offsets = [16, 0], sizes = [8, 128], strides = [1, 1]} : vector<32x128xf32> to vector<8x128xf32>
    %25 = arith.negf %24 : vector<8x128xf32>
    %26 = math.exp %25 : vector<8x128xf32>
    %cst_12 = arith.constant 1.000000e+00 : f32
    %27 = vector.broadcast %cst_12 : f32 to vector<8x128xf32>
    %28 = arith.addf %27, %26 : vector<8x128xf32>
    %29 = arith.divf %27, %28 : vector<8x128xf32>
    %30 = vector.extract_strided_slice %11 {offsets = [24, 0], sizes = [8, 128], strides = [1, 1]} : vector<32x128xf32> to vector<8x128xf32>
    %31 = math.tanh %30 : vector<8x128xf32>
    %c0_13 = arith.constant 0 : index
    %c0_14 = arith.constant 0 : index
    %32 = vector.load %arg4[%c0_13, %c0_14] : memref<8x128xf32, #tpu.memory_space<vmem>>, vector<8x128xf32>
    %33 = arith.mulf %23, %32 : vector<8x128xf32>
    %34 = arith.mulf %17, %31 : vector<8x128xf32>
    %35 = arith.addf %33, %34 : vector<8x128xf32>
    %c0_15 = arith.constant 0 : index
    %c0_16 = arith.constant 0 : index
    %36 = vector.load %arg6[%c0_15, %c0_16] : memref<8x128xf32, #tpu.memory_space<vmem>>, vector<8x128xf32>
    tpu.vector_store %arg6[%c0_15, %c0_16], %35 {strides = array<i32>} : memref<8x128xf32, #tpu.memory_space<vmem>>, vector<8x128xf32>,
    %37 = math.tanh %35 : vector<8x128xf32>
    %38 = arith.mulf %29, %37 : vector<8x128xf32>
    %c0_17 = arith.constant 0 : index
    %c0_18 = arith.constant 0 : index
    %39 = vector.load %arg5[%c0_17, %c0_18] : memref<8x128xf32, #tpu.memory_space<vmem>>, vector<8x128xf32>
    tpu.vector_store %arg5[%c0_17, %c0_18], %38 {strides = array<i32>} : memref<8x128xf32, #tpu.memory_space<vmem>>, vector<8x128xf32>,
    return
  }
}

</mosaic_0001>

<llo_original>
// kernel: tpu_custom_call.1
$region0: #{tpu_custom_call.1}
  #allocation0 [shape = 'u32[]', space=smem, size = 0x4, offset = 0x4, fixed_abs, tag = 'smem constant byte address 0x4 - core index']
  #allocation1 [shape = 'u32[72,128]{1,0:T(1,128)}', space=vmem, size = 0x9000, scoped, tag = 'internal scratch']
  %s0 = inlined_call_operand.hbm [shape: f32[32,128], index: 0, kind: input, shape index: {}]
  %s1 = inlined_call_operand.hbm [shape: f32[32,32], index: 1, kind: input, shape index: {}]
  %s2 = inlined_call_operand.hbm [shape: f32[384,128], index: 2, kind: input, shape index: {}]
  %s3 = inlined_call_operand.hbm [shape: f32[32,128], index: 3, kind: input, shape index: {}]
  %s4 = inlined_call_operand.hbm [shape: f32[8,128], index: 4, kind: input, shape index: {}]
  %s5 = inlined_call_operand.hbm [shape: f32[8,128], index: 5, kind: output, shape index: {0}]
  %s6 = inlined_call_operand.hbm [shape: f32[8,128], index: 6, kind: output, shape index: {1}]
  %7 = xla_tuple %s5, %s6
  %s8 = sld [smem:[#allocation0]]
  $region58: #{tpu_custom_call.1} parent=0
    _
  %s10 = ssub.s32 1, %s8
  %s11 = scalar_select 0, %s10, %s8
  $region1: #{tpu_custom_call.1} parent=0
    #allocation2 [shape = 'u8[16384]{0}', space=vmem, size = 0x4000, scoped, tag = 'input window, operand 0, single buffered']
    #allocation3 [shape = 's32[1]{0}', space=sflag, size = 0x4, scoped, tag = 'scoped memory for tpu_custom_call.1']
    #allocation4 [shape = 's32[1]{0}', space=sflag, size = 0x4, scoped, tag = 'scoped memory for tpu_custom_call.1']
    #allocation5 [shape = 'u8[16384]{0}', space=vmem, size = 0x4000, scoped, tag = 'input window, operand 1, single buffered']
    #allocation6 [shape = 's32[1]{0}', space=sflag, size = 0x4, scoped, tag = 'scoped memory for tpu_custom_call.1']
    #allocation7 [shape = 'u8[196608]{0}', space=vmem, size = 0x30000, scoped, tag = 'input window, operand 2, single buffered']
    #allocation8 [shape = 'u8[16384]{0}', space=vmem, size = 0x4000, scoped, tag = 'input window, operand 3, single buffered']
    #allocation9 [shape = 's32[1]{0}', space=sflag, size = 0x4, scoped, tag = 'scoped memory for tpu_custom_call.1']
    #allocation10 [shape = 'u8[4096]{0}', space=vmem, size = 0x1000, scoped, tag = 'input window, operand 4, single buffered']
    #allocation11 [shape = 'u8[4096]{0}', space=vmem, size = 0x1000, scoped, tag = 'output window, operand 0, single buffered']
    #allocation12 [shape = 'u8[4096]{0}', space=vmem, size = 0x1000, scoped, tag = 'output window, operand 1, single buffered']
    #allocation13 [shape = 's32[1]{0}', space=sflag, size = 0x4, scoped, tag = 'scoped memory for tpu_custom_call.1']
    %12 = vsyncpa [#allocation3], 0
    %13 = vsyncpa [#allocation6], 0
    %14 = vsyncpa [#allocation9], 0
    %15 = vsyncpa [#allocation4], 0
    %16 = vsyncpa [#allocation13], 0
    // Predicated region
    $region2: #{tpu_custom_call.1} parent=1 // pred_check
      _
    $region3: #{tpu_custom_call.1} parent=1 // pred_check_branch
      %18 = sbr.rel (0) target = $region5
    $region4: #{tpu_custom_call.1} parent=1 // pred_region
      %20 = vsyncadd [#allocation3], 0
      %s21 = sshll.u32 %s0, 4
      %s22 = int_to_ptr.hbm [resolvable:$true] %s21
      %s23 = sshll.u32 [#allocation2], 4
      %s24 = int_to_ptr.vmem [resolvable:$true] %s23
      %29 = dma.hbm_to_vmem [thread:$0]  %s22, 512, %s24, [#allocation3], 128, 128, 8
    $region5: #{tpu_custom_call.1} parent=1 // pred_fallthru
      _
    // Predicated region
    $region6: #{tpu_custom_call.1} parent=1 // pred_check
      _
    $region7: #{tpu_custom_call.1} parent=1 // pred_check_branch
      %31 = sbr.rel (0) target = $region9
    $region8: #{tpu_custom_call.1} parent=1 // pred_region
      %33 = vsyncadd [#allocation6], 0
      %s34 = sshll.u32 %s1, 4
      %s35 = int_to_ptr.hbm [resolvable:$true] %s34
      %s36 = sshll.u32 [#allocation5], 4
      %s37 = int_to_ptr.vmem [resolvable:$true] %s36
      %42 = dma.hbm_to_vmem [thread:$0]  %s35, 512, %s37, [#allocation6], 128, 128, 8
    $region9: #{tpu_custom_call.1} parent=1 // pred_fallthru
      _
    // Predicated region
    $region10: #{tpu_custom_call.1} parent=1 // pred_check
      _
    $region11: #{tpu_custom_call.1} parent=1 // pred_check_branch
      %44 = sbr.rel (0) target = $region13
    $region12: #{tpu_custom_call.1} parent=1 // pred_region
      %46 = vsyncadd [#allocation6], 0
      %s47 = sshll.u32 %s2, 4
      %s48 = int_to_ptr.hbm [resolvable:$true] %s47
      %s49 = sshll.u32 [#allocation7], 4
      %s50 = int_to_ptr.vmem [resolvable:$true] %s49
      %55 = dma.hbm_to_vmem [thread:$0]  %s48, 6144, %s50, [#allocation6], 128, 128, 8
    $region13: #{tpu_custom_call.1} parent=1 // pred_fallthru
      _
    // Predicated region
    $region14: #{tpu_custom_call.1} parent=1 // pred_check
      _
    $region15: #{tpu_custom_call.1} parent=1 // pred_check_branch
      %57 = sbr.rel (0) target = $region17
    $region16: #{tpu_custom_call.1} parent=1 // pred_region
      %59 = vsyncadd [#allocation9], 0
      %s60 = sshll.u32 %s3, 4
      %s61 = int_to_ptr.hbm [resolvable:$true] %s60
      %s62 = sshll.u32 [#allocation8], 4
      %s63 = int_to_ptr.vmem [resolvable:$true] %s62
      %68 = dma.hbm_to_vmem [thread:$0]  %s61, 512, %s63, [#allocation9], 128, 128, 8
    $region17: #{tpu_custom_call.1} parent=1 // pred_fallthru
      _
    // Predicated region
    $region18: #{tpu_custom_call.1} parent=1 // pred_check
      _
    $region19: #{tpu_custom_call.1} parent=1 // pred_check_branch
      %70 = sbr.rel (0) target = $region21
    $region20: #{tpu_custom_call.1} parent=1 // pred_region
      %72 = vsyncadd [#allocation9], 0
      %s74 = sshll.u32 %s4, 4
      %s75 = int_to_ptr.hbm [resolvable:$true] %s74
      %s76 = sshll.u32 [#allocation10], 4
      %s77 = int_to_ptr.vmem [resolvable:$true] %s76
      %79 = dma.hbm_to_vmem [thread:$0]  %s75, 128, %s77, [#allocation9]
    $region21: #{tpu_custom_call.1} parent=1 // pred_fallthru
      _
    // Predicated region
    $region22: #{tpu_custom_call.1} parent=1 // pred_check
      _
    $region23: #{tpu_custom_call.1} parent=1 // pred_check_branch
      %81 = sbr.rel (0) target = $region25
    $region24: #{tpu_custom_call.1} parent=1 // pred_region
      %83 = dma.done [#allocation3], 512
    $region25: #{tpu_custom_call.1} parent=1 // pred_fallthru
      _
    // Predicated region
    $region26: #{tpu_custom_call.1} parent=1 // pred_check
      _
    $region27: #{tpu_custom_call.1} parent=1 // pred_check_branch
      %85 = sbr.rel (0) target = $region29
    $region28: #{tpu_custom_call.1} parent=1 // pred_region
      %87 = dma.done [#allocation6], 512
    $region29: #{tpu_custom_call.1} parent=1 // pred_fallthru
      _
    // Predicated region
    $region30: #{tpu_custom_call.1} parent=1 // pred_check
      _
    $region31: #{tpu_custom_call.1} parent=1 // pred_check_branch
      %89 = sbr.rel (0) target = $region33
    $region32: #{tpu_custom_call.1} parent=1 // pred_region
      %91 = dma.done [#allocation6], 6144
    $region33: #{tpu_custom_call.1} parent=1 // pred_fallthru
      _
    // Predicated region
    $region34: #{tpu_custom_call.1} parent=1 // pred_check
      _
    $region35: #{tpu_custom_call.1} parent=1 // pred_check_branch
      %93 = sbr.rel (0) target = $region37
    $region36: #{tpu_custom_call.1} parent=1 // pred_region
      %95 = dma.done [#allocation9], 512
    $region37: #{tpu_custom_call.1} parent=1 // pred_fallthru
      _
    // Predicated region
    $region38: #{tpu_custom_call.1} parent=1 // pred_check
      _
    $region39: #{tpu_custom_call.1} parent=1 // pred_check_branch
      %97 = sbr.rel (0) target = $region41
    $region40: #{tpu_custom_call.1} parent=1 // pred_region
      %99 = dma.done [#allocation9], 128
    $region41: #{tpu_custom_call.1} parent=1 // pred_fallthru
      _
    %v100 = vld [vmem:[#allocation2] sm:$0xff]
    %v101 = vld [vmem:[#allocation2 + $0x8] sm:$0xff]
    %v102 = vld [vmem:[#allocation2 + $0x10] sm:$0xff]
    %v103 = vld [vmem:[#allocation2 + $0x18] sm:$0xff]
    %v104 = vld [vmem:[#allocation5] sm:$0xff]
    %v105 = vld [vmem:[#allocation5 + $0x8] sm:$0xff]
    %v106 = vld [vmem:[#allocation5 + $0x10] sm:$0xff]
    %v107 = vld [vmem:[#allocation5 + $0x18] sm:$0xff]
    %vm108 = vcmask 261120
    %v110 = vsel %vm108, %v104, 0
    %v113 = vsel %vm108, %v105, 0
    %v116 = vsel %vm108, %v106, 0
    %v119 = vsel %vm108, %v107, 0
    %121 = vmatpush.msra.mxu0 0.0
    %122 = vmatpush.msra.mxu0 0.0
    %123 = vmatpush.msra.mxu0 0.0
    %124 = vmatpush.msra.mxu0 0.0
    %125 = vmatpush.msra.mxu0 0.0
    %126 = vmatpush.msra.mxu0 0.0
    %127 = vmatpush.msra.mxu0 0.0
    %128 = vmatpush.msra.mxu0 0.0
    %129 = vmatpush.msra.mxu0 0.0
    %130 = vmatpush.msra.mxu0 0.0
    %131 = vmatpush.msra.mxu0 0.0
    %132 = vmatpush.msra.mxu0 0.0
    %133 = vmatpush.msra.mxu0 %v103
    %134 = vmatpush.msra.mxu0 %v102
    %135 = vmatpush.msra.mxu0 %v101
    %136 = vmatpush.msra.mxu0 %v100
    %137 = vmatmul.f32.gmra.mxu0 %v110
    %v138 = vpop.f32.mrf.mxu0
    %v139 = vadd.f32 0.0, %v138
    %140 = vmatmul.f32.gmra.mxu0 %v113
    %v141 = vpop.f32.mrf.mxu0
    %v142 = vadd.f32 0.0, %v141
    %143 = vmatmul.f32.gmra.mxu0 %v116
    %v144 = vpop.f32.mrf.mxu0
    %v145 = vadd.f32 0.0, %v144
    %146 = vmatmul.f32.gmra.mxu0 %v119
    %v147 = vpop.f32.mrf.mxu0
    %v148 = vadd.f32 0.0, %v147
    %149 = vdwg.mxu0
    %150 = vmatpush.msra.mxu0 0.0
    %151 = vmatpush.msra.mxu0 0.0
    %152 = vmatpush.msra.mxu0 0.0
    %153 = vmatpush.msra.mxu0 0.0
    %154 = vmatpush.msra.mxu0 0.0
    %155 = vmatpush.msra.mxu0 0.0
    %156 = vmatpush.msra.mxu0 0.0
    %157 = vmatpush.msra.mxu0 0.0
    %158 = vmatpush.msra.mxu0 0.0
    %159 = vmatpush.msra.mxu0 0.0
    %160 = vmatpush.msra.mxu0 0.0
    %161 = vmatpush.msra.mxu0 0.0
    %162 = vmatpush.msra.mxu0 %v148
    %163 = vmatpush.msra.mxu0 %v145
    %164 = vmatpush.msra.mxu0 %v142
    %165 = vmatpush.msra.mxu0 %v139
    %166 = vmatmul.f32.gmra.mxu0 %v110
    %v167 = vpop.f32.mrf.mxu0
    %v168 = vadd.f32 0.0, %v167
    %169 = vmatmul.f32.gmra.mxu0 %v113
    %v170 = vpop.f32.mrf.mxu0
    %v171 = vadd.f32 0.0, %v170
    %172 = vmatmul.f32.gmra.mxu0 %v116
    %v173 = vpop.f32.mrf.mxu0
    %v174 = vadd.f32 0.0, %v173
    %175 = vmatmul.f32.gmra.mxu0 %v119
    %v176 = vpop.f32.mrf.mxu0
    %v177 = vadd.f32 0.0, %v176
    %178 = vdwg.mxu0
    %v179 = vmul.f32 %v168, 2.0
    %v180 = vmul.f32 %v171, 2.0
    %v181 = vmul.f32 %v174, 2.0
    %v182 = vmul.f32 %v177, 2.0
    %v183 = vsub.f32 %v179, %v100
    %v184 = vsub.f32 %v180, %v101
    %v185 = vsub.f32 %v181, %v102
    %v186 = vsub.f32 %v182, %v103
    %v187 = vld [vmem:[#allocation7] sm:$0xff]
    %v188 = vld [vmem:[#allocation7 + $0x8] sm:$0xff]
    %v189 = vld [vmem:[#allocation7 + $0x10] sm:$0xff]
    %v190 = vld [vmem:[#allocation7 + $0x18] sm:$0xff]
    %v191 = vld [vmem:[#allocation7 + $0x20] sm:$0xff]
    %v192 = vld [vmem:[#allocation7 + $0x28] sm:$0xff]
    %v193 = vld [vmem:[#allocation7 + $0x30] sm:$0xff]
    %v194 = vld [vmem:[#allocation7 + $0x38] sm:$0xff]
    %v195 = vld [vmem:[#allocation7 + $0x40] sm:$0xff]
    %v196 = vld [vmem:[#allocation7 + $0x48] sm:$0xff]
    %v197 = vld [vmem:[#allocation7 + $0x50] sm:$0xff]
    %v198 = vld [vmem:[#allocation7 + $0x58] sm:$0xff]
    %v199 = vld [vmem:[#allocation7 + $0x60] sm:$0xff]
    %v200 = vld [vmem:[#allocation7 + $0x68] sm:$0xff]
    %v201 = vld [vmem:[#allocation7 + $0x70] sm:$0xff]
    %v202 = vld [vmem:[#allocation7 + $0x78] sm:$0xff]
    %v203 = vld [vmem:[#allocation7 + $0x80] sm:$0xff]
    %v204 = vld [vmem:[#allocation7 + $0x88] sm:$0xff]
    %v205 = vld [vmem:[#allocation7 + $0x90] sm:$0xff]
    %v206 = vld [vmem:[#allocation7 + $0x98] sm:$0xff]
    %v207 = vld [vmem:[#allocation7 + $0xa0] sm:$0xff]
    %v208 = vld [vmem:[#allocation7 + $0xa8] sm:$0xff]
    %v209 = vld [vmem:[#allocation7 + $0xb0] sm:$0xff]
    %v210 = vld [vmem:[#allocation7 + $0xb8] sm:$0xff]
    %v211 = vld [vmem:[#allocation7 + $0xc0] sm:$0xff]
    %v212 = vld [vmem:[#allocation7 + $0xc8] sm:$0xff]
    %v213 = vld [vmem:[#allocation7 + $0xd0] sm:$0xff]
    %v214 = vld [vmem:[#allocation7 + $0xd8] sm:$0xff]
    %v215 = vld [vmem:[#allocation7 + $0xe0] sm:$0xff]
    %v216 = vld [vmem:[#allocation7 + $0xe8] sm:$0xff]
    %v217 = vld [vmem:[#allocation7 + $0xf0] sm:$0xff]
    %v218 = vld [vmem:[#allocation7 + $0xf8] sm:$0xff]
    %v219 = vld [vmem:[#allocation7 + $0x100] sm:$0xff]
    %v220 = vld [vmem:[#allocation7 + $0x108] sm:$0xff]
    %v221 = vld [vmem:[#allocation7 + $0x110] sm:$0xff]
    %v222 = vld [vmem:[#allocation7 + $0x118] sm:$0xff]
    %v223 = vld [vmem:[#allocation7 + $0x120] sm:$0xff]
    %v224 = vld [vmem:[#allocation7 + $0x128] sm:$0xff]
    %v225 = vld [vmem:[#allocation7 + $0x130] sm:$0xff]
    %v226 = vld [vmem:[#allocation7 + $0x138] sm:$0xff]
    %v227 = vld [vmem:[#allocation7 + $0x140] sm:$0xff]
    %v228 = vld [vmem:[#allocation7 + $0x148] sm:$0xff]
    %v229 = vld [vmem:[#allocation7 + $0x150] sm:$0xff]
    %v230 = vld [vmem:[#allocation7 + $0x158] sm:$0xff]
    %v231 = vld [vmem:[#allocation7 + $0x160] sm:$0xff]
    %v232 = vld [vmem:[#allocation7 + $0x168] sm:$0xff]
    %v233 = vld [vmem:[#allocation7 + $0x170] sm:$0xff]
    %v234 = vld [vmem:[#allocation7 + $0x178] sm:$0xff]
    %v235 = vld [vmem:[#allocation8] sm:$0xff]
    %v236 = vld [vmem:[#allocation8 + $0x8] sm:$0xff]
    %v237 = vld [vmem:[#allocation8 + $0x10] sm:$0xff]
    %v238 = vld [vmem:[#allocation8 + $0x18] sm:$0xff]
    %239 = vmatpush.msra.mxu0 %v202
    %240 = vmatpush.msra.mxu0 %v201
    %241 = vmatpush.msra.mxu0 %v200
    %242 = vmatpush.msra.mxu0 %v199
    %243 = vmatpush.msra.mxu0 %v198
    %244 = vmatpush.msra.mxu0 %v197
    %245 = vmatpush.msra.mxu0 %v196
    %246 = vmatpush.msra.mxu0 %v195
    %247 = vmatpush.msra.mxu0 %v194
    %248 = vmatpush.msra.mxu0 %v193
    %249 = vmatpush.msra.mxu0 %v192
    %250 = vmatpush.msra.mxu0 %v191
    %251 = vmatpush.msra.mxu0 %v190
    %252 = vmatpush.msra.mxu0 %v189
    %253 = vmatpush.msra.mxu0 %v188
    %254 = vmatpush.msra.mxu0 %v187
    %255 = vmatmul.f32.gmra.mxu0 %v100
    %v256 = vpop.f32.mrf.mxu0
    %v257 = vadd.f32 %v235, %v256
    %258 = vmatmul.f32.gmra.mxu0 %v101
    %v259 = vpop.f32.mrf.mxu0
    %v260 = vadd.f32 %v236, %v259
    %261 = vmatmul.f32.gmra.mxu0 %v102
    %v262 = vpop.f32.mrf.mxu0
    %v263 = vadd.f32 %v237, %v262
    %264 = vmatmul.f32.gmra.mxu0 %v103
    %v265 = vpop.f32.mrf.mxu0
    %v266 = vadd.f32 %v238, %v265
    %267 = vdwg.mxu0
    %268 = vmatpush.msra.mxu0 %v218
    %269 = vmatpush.msra.mxu0 %v217
    %270 = vmatpush.msra.mxu0 %v216
    %271 = vmatpush.msra.mxu0 %v215
    %272 = vmatpush.msra.mxu0 %v214
    %273 = vmatpush.msra.mxu0 %v213
    %274 = vmatpush.msra.mxu0 %v212
    %275 = vmatpush.msra.mxu0 %v211
    %276 = vmatpush.msra.mxu0 %v210
    %277 = vmatpush.msra.mxu0 %v209
    %278 = vmatpush.msra.mxu0 %v208
    %279 = vmatpush.msra.mxu0 %v207
    %280 = vmatpush.msra.mxu0 %v206
    %281 = vmatpush.msra.mxu0 %v205
    %282 = vmatpush.msra.mxu0 %v204
    %283 = vmatpush.msra.mxu0 %v203
    %284 = vmatmul.f32.gmra.mxu0 %v139
    %v285 = vpop.f32.mrf.mxu0
    %v286 = vadd.f32 %v257, %v285
    %287 = vmatmul.f32.gmra.mxu0 %v142
    %v288 = vpop.f32.mrf.mxu0
    %v289 = vadd.f32 %v260, %v288
    %290 = vmatmul.f32.gmra.mxu0 %v145
    %v291 = vpop.f32.mrf.mxu0
    %v292 = vadd.f32 %v263, %v291
    %293 = vmatmul.f32.gmra.mxu0 %v148
    %v294 = vpop.f32.mrf.mxu0
    %v295 = vadd.f32 %v266, %v294
    %296 = vdwg.mxu0
    %297 = vmatpush.msra.mxu0 %v234
    %298 = vmatpush.msra.mxu0 %v233
    %299 = vmatpush.msra.mxu0 %v232
    %300 = vmatpush.msra.mxu0 %v231
    %301 = vmatpush.msra.mxu0 %v230
    %302 = vmatpush.msra.mxu0 %v229
    %303 = vmatpush.msra.mxu0 %v228
    %304 = vmatpush.msra.mxu0 %v227
    %305 = vmatpush.msra.mxu0 %v226
    %306 = vmatpush.msra.mxu0 %v225
    %307 = vmatpush.msra.mxu0 %v224
    %308 = vmatpush.msra.mxu0 %v223
    %309 = vmatpush.msra.mxu0 %v222
    %310 = vmatpush.msra.mxu0 %v221
    %311 = vmatpush.msra.mxu0 %v220
    %312 = vmatpush.msra.mxu0 %v219
    %313 = vmatmul.f32.gmra.mxu0 %v183
    %v314 = vpop.f32.mrf.mxu0
    %v315 = vadd.f32 %v286, %v314
    %316 = vmatmul.f32.gmra.mxu0 %v184
    %v317 = vpop.f32.mrf.mxu0
    %v318 = vadd.f32 %v289, %v317
    %319 = vmatmul.f32.gmra.mxu0 %v185
    %v320 = vpop.f32.mrf.mxu0
    %v321 = vadd.f32 %v292, %v320
    %322 = vmatmul.f32.gmra.mxu0 %v186
    %v323 = vpop.f32.mrf.mxu0
    %v324 = vadd.f32 %v295, %v323
    %325 = vdwg.mxu0
    %v326 = vxor.u32 %v315, 2147483648
    %v327 = vmul.f32 %v326, 1.442695
    %v328 = vpow.pop %v327
    %v329 = vadd.f32 %v328, 1.0
    %v330 = vrcp.pop %v329
    %v331 = vmul.f32 %v329, %v330
    %v332 = vsub.f32 1.0, %v331
    %v333 = vmul.f32 %v330, %v332
    %v334 = vadd.f32 %v330, %v333
    %vm335 = vweird.f32 %v329
    %vm336 = vweird.f32 %v330
    %vm337 = vmor %vm335, %vm336
    %v338 = vsel %vm337, %v330, %v334
    %v339 = vand.u32 2147483647, %v329
    %vm340 = vcmp.eq.f32.partialorder %v339, 8.507059e+37
    %v341 = vand.u32 %v329, 2147483648
    %v342 = vor.u32 1.1754944e-38, %v341
    %v343 = vsel %vm340, %v342, %v338
    %v344 = vmul.f32 1.0, %v343
    %v345 = vxor.u32 %v318, 2147483648
    %v346 = vmul.f32 %v345, 1.442695
    %v347 = vpow.pop %v346
    %v348 = vadd.f32 %v347, 1.0
    %v349 = vrcp.pop %v348
    %v350 = vmul.f32 %v348, %v349
    %v351 = vsub.f32 1.0, %v350
    %v352 = vmul.f32 %v349, %v351
    %v353 = vadd.f32 %v349, %v352
    %vm354 = vweird.f32 %v348
    %vm355 = vweird.f32 %v349
    %vm356 = vmor %vm354, %vm355
    %v357 = vsel %vm356, %v349, %v353
    %v358 = vand.u32 2147483647, %v348
    %vm359 = vcmp.eq.f32.partialorder %v358, 8.507059e+37
    %v360 = vand.u32 %v348, 2147483648
    %v361 = vor.u32 1.1754944e-38, %v360
    %v362 = vsel %vm359, %v361, %v357
    %v363 = vmul.f32 1.0, %v362
    %v364 = vxor.u32 %v321, 2147483648
    %v365 = vmul.f32 %v364, 1.442695
    %v366 = vpow.pop %v365
    %v367 = vadd.f32 %v366, 1.0
    %v368 = vrcp.pop %v367
    %v369 = vmul.f32 %v367, %v368
    %v370 = vsub.f32 1.0, %v369
    %v371 = vmul.f32 %v368, %v370
    %v372 = vadd.f32 %v368, %v371
    %vm373 = vweird.f32 %v367
    %vm374 = vweird.f32 %v368
    %vm375 = vmor %vm373, %vm374
    %v376 = vsel %vm375, %v368, %v372
    %v377 = vand.u32 2147483647, %v367
    %vm378 = vcmp.eq.f32.partialorder %v377, 8.507059e+37
    %v379 = vand.u32 %v367, 2147483648
    %v380 = vor.u32 1.1754944e-38, %v379
    %v381 = vsel %vm378, %v380, %v376
    %v382 = vmul.f32 1.0, %v381
    %v383 = vtanh.pop %v324
    %v384 = vld [vmem:[#allocation10] sm:$0xff]
    %v385 = vmul.f32 %v363, %v384
    %v386 = vmul.f32 %v344, %v383
    %v387 = vadd.f32 %v385, %v386
    %388 = vst [vmem:[#allocation12] sm:$0xff] %v387
    %v389 = vtanh.pop %v387
    %v390 = vmul.f32 %v382, %v389
    %391 = vst [vmem:[#allocation11] sm:$0xff] %v390
    // Predicated region
    $region42: #{tpu_custom_call.1} parent=1 // pred_check
      _
    $region43: #{tpu_custom_call.1} parent=1 // pred_check_branch
      %393 = sbr.rel (0) target = $region45
    $region44: #{tpu_custom_call.1} parent=1 // pred_region
      %395 = vsyncadd [#allocation4], 0
      %s397 = sshll.u32 [#allocation11], 4
      %s398 = int_to_ptr.vmem [resolvable:$true] %s397
      %s399 = sshll.u32 %s5, 4
      %s400 = int_to_ptr.hbm [resolvable:$true] %s399
      %402 = dma.vmem_to_hbm [thread:$0]  %s398, 128, %s400, [#allocation4]
    $region45: #{tpu_custom_call.1} parent=1 // pred_fallthru
      _
    // Predicated region
    $region46: #{tpu_custom_call.1} parent=1 // pred_check
      _
    $region47: #{tpu_custom_call.1} parent=1 // pred_check_branch
      %404 = sbr.rel (0) target = $region49
    $region48: #{tpu_custom_call.1} parent=1 // pred_region
      %406 = vsyncadd [#allocation13], 0
      %s408 = sshll.u32 [#allocation12], 4
      %s409 = int_to_ptr.vmem [resolvable:$true] %s408
      %s410 = sshll.u32 %s6, 4
      %s411 = int_to_ptr.hbm [resolvable:$true] %s410
      %413 = dma.vmem_to_hbm [thread:$0]  %s409, 128, %s411, [#allocation13]
    $region49: #{tpu_custom_call.1} parent=1 // pred_fallthru
      _
    // Predicated region
    $region50: #{tpu_custom_call.1} parent=1 // pred_check
      _
    $region51: #{tpu_custom_call.1} parent=1 // pred_check_branch
      %415 = sbr.rel (0) target = $region53
    $region52: #{tpu_custom_call.1} parent=1 // pred_region
      %417 = dma.done [#allocation4], 128
    $region53: #{tpu_custom_call.1} parent=1 // pred_fallthru
      _
    // Predicated region
    $region54: #{tpu_custom_call.1} parent=1 // pred_check
      _
    $region55: #{tpu_custom_call.1} parent=1 // pred_check_branch
      %419 = sbr.rel (0) target = $region57
    $region56: #{tpu_custom_call.1} parent=1 // pred_region
      %421 = dma.done [#allocation13], 128
    $region57: #{tpu_custom_call.1} parent=1 // pred_fallthru
      _
    %422 = vsyncpa [#allocation3], 1
    %423 = vsyncpa [#allocation6], 1
    %424 = vsyncpa [#allocation9], 1
    %425 = vsyncpa [#allocation4], 1
    %426 = vsyncpa [#allocation13], 1

</llo_original>
